<compile_context>
chip_gen: v7x
topology: tpu7x:2x2x1
jax: 0.10.0
libtpu: 0.0.40
codegen_flags: <defaults>
</compile_context>

<pallas_src>
import jax
import jax.numpy as jnp
from jax.experimental import pallas as pl
from jax.experimental.pallas import tpu as pltpu

EPS = 1e-5
NEG_SLOPE = 0.2
LANE = 128
BATCH_PAD = 16  # bf16 sublane pack


def _round_up(x, m):
    return (x + m - 1) // m * m


def _mlp_kernel(x_ref, w1_ref, wrest_ref, wout_ref, scale_ref, bias_ref,
                oscale_ref, obias_ref, out_ref, h_ref):
    """Grid axis = hidden-layer index (4 steps).

    step 0    : h = leaky(scale1 * (x @ W1q) + b1)
    step 1..3 : h = leaky(scalel * (h @ Wlq) + bl)   Wl from the (3, H, H) int8 stack
    step 3    : out = oscale * (h @ Woutq) + b_out
    Eval-mode BatchNorm and the int8 per-channel dequant scales are folded into
    the f32 epilogue (scale * acc + bias) on the host side.
    """
    l = pl.program_id(0)
    last = pl.num_programs(0) - 1

    def _leaky(z):
        return jnp.maximum(z, NEG_SLOPE * z)

    @pl.when(l == 0)
    def _first_layer():
        w = w1_ref[...].astype(jnp.bfloat16)             # int8 -> bf16 (exact)
        acc = jnp.dot(x_ref[...].astype(jnp.bfloat16), w,
                      preferred_element_type=jnp.float32)
        h_ref[...] = _leaky(acc * scale_ref[0] + bias_ref[0])

    @pl.when(l > 0)
    def _hidden_layer():
        w = wrest_ref[...].astype(jnp.bfloat16)
        acc = jnp.dot(h_ref[...].astype(jnp.bfloat16), w,
                      preferred_element_type=jnp.float32)
        h_ref[...] = _leaky(acc * scale_ref[l] + bias_ref[l])

    @pl.when(l == last)
    def _head():
        w = wout_ref[...].astype(jnp.bfloat16)
        acc = jnp.dot(h_ref[...].astype(jnp.bfloat16), w,
                      preferred_element_type=jnp.float32)
        out_ref[...] = acc * oscale_ref[...] + obias_ref[...]


def aff_emoca_mlp(feats, prepared):
    """feats: (B_pad, IN_PAD) f32.  Returns (B_pad, OUT_PAD) f32."""
    w1q, wrestq, woutq, scales, biases, oscale, obias = prepared
    bp, in_pad = feats.shape
    h = w1q.shape[1]
    out_pad = woutq.shape[1]

    i8, bf16, f32 = 1, 2, 4
    need = (2 * h * h * i8               # double-buffered int8 hidden-weight tile
            + h * h * bf16               # dequantized bf16 temp for one tile
            + in_pad * h * (i8 + bf16)   # W1 (single-buffered) + dequant temp
            + h * out_pad * (i8 + bf16)  # W_out + dequant temp
            + 8 * h * f32                # per-layer scales + biases
            + 2 * out_pad * f32          # head scale + bias
            + bp * in_pad * (f32 + bf16) # x + its bf16 cast
            + 2 * bp * out_pad * f32     # output block
            + bp * h * (f32 + bf16))     # activation scratch + bf16 cast
    vmem_limit = int(min(need + (8 << 20), 56 << 20))

    single = pl.Buffered(1)
    return pl.pallas_call(
        _mlp_kernel,
        out_shape=jax.ShapeDtypeStruct((bp, out_pad), jnp.float32),
        grid=(4,),
        in_specs=[
            pl.BlockSpec((bp, in_pad), lambda l: (0, 0), pipeline_mode=single),   # x
            pl.BlockSpec((in_pad, h), lambda l: (0, 0), pipeline_mode=single),    # W1 (int8)
            pl.BlockSpec((None, h, h),                                            # W2..W4 stack (int8)
                         lambda l: (jnp.maximum(l - 1, 0), 0, 0)),
            pl.BlockSpec((h, out_pad), lambda l: (0, 0), pipeline_mode=single),   # W_out (int8)
            pl.BlockSpec((4, 1, h), lambda l: (0, 0, 0), pipeline_mode=single),   # dequant+BN scales
            pl.BlockSpec((4, 1, h), lambda l: (0, 0, 0), pipeline_mode=single),   # folded biases
            pl.BlockSpec((1, out_pad), lambda l: (0, 0), pipeline_mode=single),   # head scale
            pl.BlockSpec((1, out_pad), lambda l: (0, 0), pipeline_mode=single),   # head bias
        ],
        out_specs=pl.BlockSpec((bp, out_pad), lambda l: (0, 0)),
        scratch_shapes=[pltpu.VMEM((bp, h), jnp.float32)],
        compiler_params=pltpu.CompilerParams(
            dimension_semantics=("arbitrary",),
            vmem_limit_bytes=vmem_limit),
    )(feats, w1q, wrestq, woutq, scales, biases, oscale, obias)


def init_params(key, input_size, hidden_size, output_size):
    """Deterministic synthetic raw parameters (PyTorch-equivalent, W as (in, out))."""
    dims_in = [input_size, hidden_size, hidden_size, hidden_size]
    params = []
    for i, d_in in enumerate(dims_in):
        k = jax.random.fold_in(key, i)
        kw, kb, kg, kbe, km, kv = jax.random.split(k, 6)
        w = jax.random.normal(kw, (d_in, hidden_size), jnp.float32) * 0.02
        bias = jax.random.normal(kb, (1, hidden_size), jnp.float32) * 0.01
        gamma = 1.0 + 0.05 * jax.random.normal(kg, (1, hidden_size), jnp.float32)
        beta = 0.01 * jax.random.normal(kbe, (1, hidden_size), jnp.float32)
        mean = 0.01 * jax.random.normal(km, (1, hidden_size), jnp.float32)
        var = 0.5 + jnp.abs(jax.random.normal(kv, (1, hidden_size), jnp.float32))
        params += [w, bias, gamma, beta, mean, var]
    ko = jax.random.fold_in(key, 99)
    kw, kb = jax.random.split(ko)
    params.append(jax.random.normal(kw, (hidden_size, output_size), jnp.float32) * 0.02)
    params.append(jax.random.normal(kb, (1, output_size), jnp.float32) * 0.01)
    return tuple(params)


def _quantize_per_out_channel(w):
    """Symmetric int8 per-output-channel quantization of an (in, out) weight."""
    amax = jnp.max(jnp.abs(w), axis=0, keepdims=True)            # (1, out)
    scale = jnp.maximum(amax, 1e-8) / 127.0
    q = jnp.clip(jnp.round(w / scale), -127.0, 127.0).astype(jnp.int8)
    return q, scale.astype(jnp.float32)


def prepare_params(raw_params):
    """Fold eval-mode BN into Linear (f32), pad K/N to lanes, quantize weights to int8."""
    ws, bs = [], []
    for layer in range(4):
        w, b, g, be, m, v = raw_params[layer * 6:(layer + 1) * 6]
        bn_scale = g * jax.lax.rsqrt(v.astype(jnp.float32) + EPS)      # (1, H)
        ws.append((w * bn_scale).astype(jnp.float32))                  # (in, H)
        bs.append(((b - m) * bn_scale + be).astype(jnp.float32))       # (1, H)
    in_size = ws[0].shape[0]
    in_pad = _round_up(in_size, LANE)
    ws[0] = jnp.pad(ws[0], ((0, in_pad - in_size), (0, 0)))            # zero-pad K

    quantized = [_quantize_per_out_channel(w) for w in ws]
    w1q = quantized[0][0]                                              # (IN_PAD, H) int8
    wrestq = jnp.stack([q for q, _ in quantized[1:]], axis=0)          # (3, H, H) int8
    scales = jnp.stack([s for _, s in quantized], axis=0)              # (4, 1, H) f32
    biases = jnp.stack(bs, axis=0)                                     # (4, 1, H) f32

    w_out, b_out = raw_params[24], raw_params[25]
    out_size = w_out.shape[1]
    out_pad = _round_up(out_size, LANE)
    w_out_p = jnp.pad(w_out, ((0, 0), (0, out_pad - out_size)))
    woutq, oscale = _quantize_per_out_channel(w_out_p)                 # (H, OUT_PAD) int8
    obias = jnp.pad(b_out, ((0, 0), (0, out_pad - out_size))).astype(jnp.float32)
    return (w1q, wrestq, woutq, scales, biases, oscale, obias), out_size


def aff_emoca_recognition_forward(x, emoca_feature, prepared, out_size=10):
    """Mirrors AFF_EmocaRecognition.forward -> (valence, arousal, expression)."""
    del x  # only used for .device in the PyTorch module
    # TODO(synk): input concat order relies on emoca_feature dict insertion order.
    cols = []
    for key in emoca_feature:
        cols.extend(emoca_feature[key])
    feats = jnp.stack([jnp.asarray(c, jnp.float32) for c in cols], axis=1)

    b = feats.shape[0]
    in_pad = prepared[0].shape[0]
    bp = _round_up(max(b, BATCH_PAD), BATCH_PAD)
    feats = jnp.pad(feats, ((0, bp - b), (0, in_pad - feats.shape[1])))

    out = aff_emoca_mlp(feats, prepared)
    out = out[:b, :out_size]
    expression = out[:, :8]
    arousal = out[:, 8]
    valence = out[:, 9]
    return valence, arousal, expression


def _reference_forward(feats, raw_params):
    """Pure-JAX f32 reference with unfolded BN (eval mode)."""
    h = feats.astype(jnp.float32)
    for layer in range(4):
        w, b, g, be, m, v = raw_params[layer * 6:(layer + 1) * 6]
        z = h @ w + b
        z = (z - m) * jax.lax.rsqrt(v + EPS) * g + be
        h = jnp.where(z > 0, z, NEG_SLOPE * z)
    return h @ raw_params[24] + raw_params[25]


if __name__ == "__main__":
    key = jax.random.PRNGKey(0)

    # Small but structurally faithful shapes.
    B = 8
    INPUT_SIZE = 156   # concatenated EMOCA feature codes
    HIDDEN = 256       # scaled down from 2048
    OUTPUT = 10        # 8 expression logits + arousal + valence

    raw = init_params(key, INPUT_SIZE, HIDDEN, OUTPUT)
    prepared, out_size = prepare_params(raw)

    kx, kf = jax.random.split(jax.random.fold_in(key, 7))
    x = jax.random.normal(kx, (B, 3, 16, 16), jnp.float32)  # only .device in torch

    # emoca_feature as dict[str, list of per-code (B,) tensors]
    feats_all = jax.random.normal(kf, (B, INPUT_SIZE), jnp.float32)
    feat_counts = {"expcode": 100, "posecode": 6, "shapecode": 50}  # sums to 156
    emoca_feature, idx = {}, 0
    for name, n in feat_counts.items():
        emoca_feature[name] = [feats_all[:, idx + j] for j in range(n)]
        idx += n

    valence, arousal, expression = aff_emoca_recognition_forward(
        x, emoca_feature, prepared, out_size)
    jax.block_until_ready((valence, arousal, expression))

    assert valence.shape == (B,)
    assert arousal.shape == (B,)
    assert expression.shape == (B, 8)

    # Correctness vs. pure-JAX f32 reference (loose tol: int8 weights / bf16 MXU).
    ref = _reference_forward(feats_all, raw)
    got = jnp.concatenate([expression, arousal[:, None], valence[:, None]], axis=1)
    max_err = float(jnp.max(jnp.abs(got - ref)))
    assert jnp.allclose(got, ref, rtol=0.1, atol=2e-2), max_err

    print("KERNEL_OK")
</pallas_src>

<mosaic_0001>
module attributes {stable_mosaic.version = 11 : i64} {
  func.func @_mlp_kernel(%arg0: i32, %arg1: memref<16x256xf32, #tpu.memory_space<vmem>>, %arg2: memref<256x256xi8, #tpu.memory_space<vmem>>, %arg3: memref<1x256x256xi8, #tpu.memory_space<vmem>>, %arg4: memref<256x128xi8, #tpu.memory_space<vmem>>, %arg5: memref<4x1x256xf32, #tpu.memory_space<vmem>>, %arg6: memref<4x1x256xf32, #tpu.memory_space<vmem>>, %arg7: memref<1x128xf32, #tpu.memory_space<vmem>>, %arg8: memref<1x128xf32, #tpu.memory_space<vmem>>, %arg9: memref<16x128xf32, #tpu.memory_space<vmem>>, %arg10: memref<16x256xf32, #tpu.memory_space<vmem>>) attributes {dimension_semantics = [#tpu.dimension_semantics<arbitrary>], iteration_bounds = array<i64: 4>, scalar_prefetch = 0 : i64, scratch_operands = 1 : i64, tpu.core_type = #tpu.core_type<tc>, window_params = [{pipeline_mode = #tpu.pipeline_mode<synchronous>, transform_indices = @transform_0, window_bounds = array<i64: 16, 256>}, {pipeline_mode = #tpu.pipeline_mode<synchronous>, transform_indices = @transform_1, window_bounds = array<i64: 256, 256>}, {transform_indices = @transform_2, window_bounds = array<i64: 1, 256, 256>}, {pipeline_mode = #tpu.pipeline_mode<synchronous>, transform_indices = @transform_3, window_bounds = array<i64: 256, 128>}, {pipeline_mode = #tpu.pipeline_mode<synchronous>, transform_indices = @transform_4, window_bounds = array<i64: 4, 1, 256>}, {pipeline_mode = #tpu.pipeline_mode<synchronous>, transform_indices = @transform_5, window_bounds = array<i64: 4, 1, 256>}, {pipeline_mode = #tpu.pipeline_mode<synchronous>, transform_indices = @transform_6, window_bounds = array<i64: 1, 128>}, {pipeline_mode = #tpu.pipeline_mode<synchronous>, transform_indices = @transform_7, window_bounds = array<i64: 1, 128>}, {pipeline_mode = #tpu.pipeline_mode<synchronous>, transform_indices = @transform_8, window_bounds = array<i64: 16, 128>}]} {
    %c0_i32 = arith.constant 0 : i32
    %0 = arith.cmpi eq, %arg0, %c0_i32 : i32
    %1 = arith.extui %0 : i1 to i32
    %c0_i32_0 = arith.constant 0 : i32
    %2 = arith.cmpi ne, %1, %c0_i32_0 : i32
    scf.if %2 {
      %c0 = arith.constant 0 : index
      %c0_4 = arith.constant 0 : index
      %9 = vector.load %arg2[%c0, %c0_4] : memref<256x256xi8, #tpu.memory_space<vmem>>, vector<256x256xi8>
      %10 = arith.sitofp %9 : vector<256x256xi8> to vector<256x256xbf16>
      %c0_5 = arith.constant 0 : index
      %c0_6 = arith.constant 0 : index
      %11 = vector.load %arg1[%c0_5, %c0_6] : memref<16x256xf32, #tpu.memory_space<vmem>>, vector<16x256xf32>
      %12 = arith.truncf %11 : vector<16x256xf32> to vector<16x256xbf16>
      %cst = arith.constant dense<0.000000e+00> : vector<16x256xf32>
      %13 = tpu.matmul %12, %10, %cst {dimension_numbers = #tpu.dot_dimension_numbers<[1], [0], [0], [1], [0, 0, 1, 1], [], []>} : vector<16x256xbf16>, vector<256x256xbf16>, vector<16x256xf32> -> vector<16x256xf32>
      %c0_7 = arith.constant 0 : index
      %c0_8 = arith.constant 0 : index
      %c0_9 = arith.constant 0 : index
      %14 = vector.load %arg5[%c0_7, %c0_8, %c0_9] : memref<4x1x256xf32, #tpu.memory_space<vmem>>, vector<1x1x256xf32>
      %15 = vector.shape_cast %14 : vector<1x1x256xf32> to vector<1x256xf32>
      %16 = vector.broadcast %15 : vector<1x256xf32> to vector<16x256xf32>
      %17 = arith.mulf %13, %16 : vector<16x256xf32>
      %c0_10 = arith.constant 0 : index
      %c0_11 = arith.constant 0 : index
      %c0_12 = arith.constant 0 : index
      %18 = vector.load %arg6[%c0_10, %c0_11, %c0_12] : memref<4x1x256xf32, #tpu.memory_space<vmem>>, vector<1x1x256xf32>
      %19 = vector.shape_cast %18 : vector<1x1x256xf32> to vector<1x256xf32>
      %20 = vector.broadcast %19 : vector<1x256xf32> to vector<16x256xf32>
      %21 = arith.addf %17, %20 : vector<16x256xf32>
      %cst_13 = arith.constant 2.000000e-01 : f32
      %22 = vector.broadcast %cst_13 : f32 to vector<16x256xf32>
      %23 = arith.mulf %22, %21 : vector<16x256xf32>
      %24 = arith.maximumf %21, %23 : vector<16x256xf32>
      %c0_14 = arith.constant 0 : index
      %c0_15 = arith.constant 0 : index
      %25 = vector.load %arg10[%c0_14, %c0_15] : memref<16x256xf32, #tpu.memory_space<vmem>>, vector<16x256xf32>
      tpu.vector_store %arg10[%c0_14, %c0_15], %24 {strides = array<i32>} : memref<16x256xf32, #tpu.memory_space<vmem>>, vector<16x256xf32>,
    } else {
    }
    %c0_i32_1 = arith.constant 0 : i32
    %3 = arith.cmpi sgt, %arg0, %c0_i32_1 : i32
    %4 = arith.extui %3 : i1 to i32
    %c0_i32_2 = arith.constant 0 : i32
    %5 = arith.cmpi ne, %4, %c0_i32_2 : i32
    scf.if %5 {
      %c0 = arith.constant 0 : index
      %c0_4 = arith.constant 0 : index
      %c0_5 = arith.constant 0 : index
      %9 = vector.load %arg3[%c0, %c0_4, %c0_5] : memref<1x256x256xi8, #tpu.memory_space<vmem>>, vector<1x256x256xi8>
      %10 = vector.shape_cast %9 : vector<1x256x256xi8> to vector<256x256xi8>
      %11 = arith.sitofp %10 : vector<256x256xi8> to vector<256x256xbf16>
      %c0_6 = arith.constant 0 : index
      %c0_7 = arith.constant 0 : index
      %12 = vector.load %arg10[%c0_6, %c0_7] : memref<16x256xf32, #tpu.memory_space<vmem>>, vector<16x256xf32>
      %13 = arith.truncf %12 : vector<16x256xf32> to vector<16x256xbf16>
      %cst = arith.constant dense<0.000000e+00> : vector<16x256xf32>
      %14 = tpu.matmul %13, %11, %cst {dimension_numbers = #tpu.dot_dimension_numbers<[1], [0], [0], [1], [0, 0, 1, 1], [], []>} : vector<16x256xbf16>, vector<256x256xbf16>, vector<16x256xf32> -> vector<16x256xf32>
      %15 = arith.index_cast %arg0 : i32 to index
      %c0_8 = arith.constant 0 : index
      %c0_9 = arith.constant 0 : index
      %16 = vector.load %arg5[%15, %c0_8, %c0_9] : memref<4x1x256xf32, #tpu.memory_space<vmem>>, vector<1x1x256xf32>
      %17 = vector.shape_cast %16 : vector<1x1x256xf32> to vector<1x256xf32>
      %18 = vector.broadcast %17 : vector<1x256xf32> to vector<16x256xf32>
      %19 = arith.mulf %14, %18 : vector<16x256xf32>
      %20 = arith.index_cast %arg0 : i32 to index
      %c0_10 = arith.constant 0 : index
      %c0_11 = arith.constant 0 : index
      %21 = vector.load %arg6[%20, %c0_10, %c0_11] : memref<4x1x256xf32, #tpu.memory_space<vmem>>, vector<1x1x256xf32>
      %22 = vector.shape_cast %21 : vector<1x1x256xf32> to vector<1x256xf32>
      %23 = vector.broadcast %22 : vector<1x256xf32> to vector<16x256xf32>
      %24 = arith.addf %19, %23 : vector<16x256xf32>
      %cst_12 = arith.constant 2.000000e-01 : f32
      %25 = vector.broadcast %cst_12 : f32 to vector<16x256xf32>
      %26 = arith.mulf %25, %24 : vector<16x256xf32>
      %27 = arith.maximumf %24, %26 : vector<16x256xf32>
      %c0_13 = arith.constant 0 : index
      %c0_14 = arith.constant 0 : index
      %28 = vector.load %arg10[%c0_13, %c0_14] : memref<16x256xf32, #tpu.memory_space<vmem>>, vector<16x256xf32>
      tpu.vector_store %arg10[%c0_13, %c0_14], %27 {strides = array<i32>} : memref<16x256xf32, #tpu.memory_space<vmem>>, vector<16x256xf32>,
    } else {
    }
    %c3_i32 = arith.constant 3 : i32
    %6 = arith.cmpi eq, %arg0, %c3_i32 : i32
    %7 = arith.extui %6 : i1 to i32
    %c0_i32_3 = arith.constant 0 : i32
    %8 = arith.cmpi ne, %7, %c0_i32_3 : i32
    scf.if %8 {
      %c0 = arith.constant 0 : index
      %c0_4 = arith.constant 0 : index
      %9 = vector.load %arg4[%c0, %c0_4] : memref<256x128xi8, #tpu.memory_space<vmem>>, vector<256x128xi8>
      %10 = arith.sitofp %9 : vector<256x128xi8> to vector<256x128xbf16>
      %c0_5 = arith.constant 0 : index
      %c0_6 = arith.constant 0 : index
      %11 = vector.load %arg10[%c0_5, %c0_6] : memref<16x256xf32, #tpu.memory_space<vmem>>, vector<16x256xf32>
      %12 = arith.truncf %11 : vector<16x256xf32> to vector<16x256xbf16>
      %cst = arith.constant dense<0.000000e+00> : vector<16x128xf32>
      %13 = tpu.matmul %12, %10, %cst {dimension_numbers = #tpu.dot_dimension_numbers<[1], [0], [0], [1], [0, 0, 1, 1], [], []>} : vector<16x256xbf16>, vector<256x128xbf16>, vector<16x128xf32> -> vector<16x128xf32>
      %c0_7 = arith.constant 0 : index
      %c0_8 = arith.constant 0 : index
      %14 = vector.load %arg7[%c0_7, %c0_8] : memref<1x128xf32, #tpu.memory_space<vmem>>, vector<1x128xf32>
      %15 = vector.broadcast %14 : vector<1x128xf32> to vector<16x128xf32>
      %16 = arith.mulf %13, %15 : vector<16x128xf32>
      %c0_9 = arith.constant 0 : index
      %c0_10 = arith.constant 0 : index
      %17 = vector.load %arg8[%c0_9, %c0_10] : memref<1x128xf32, #tpu.memory_space<vmem>>, vector<1x128xf32>
      %18 = vector.broadcast %17 : vector<1x128xf32> to vector<16x128xf32>
      %19 = arith.addf %16, %18 : vector<16x128xf32>
      %c0_11 = arith.constant 0 : index
      %c0_12 = arith.constant 0 : index
      %20 = vector.load %arg9[%c0_11, %c0_12] : memref<16x128xf32, #tpu.memory_space<vmem>>, vector<16x128xf32>
      tpu.vector_store %arg9[%c0_11, %c0_12], %19 {strides = array<i32>} : memref<16x128xf32, #tpu.memory_space<vmem>>, vector<16x128xf32>,
    } else {
    }
    return
  }
  func.func @transform_0(%arg0: i32) -> (i32, i32) {
    %c0_i32 = arith.constant 0 : i32
    %c0_i32_0 = arith.constant 0 : i32
    %c0_i32_1 = arith.constant 0 : i32
    return %c0_i32, %c0_i32_0 : i32, i32
  }
  func.func @transform_1(%arg0: i32) -> (i32, i32) {
    %c0_i32 = arith.constant 0 : i32
    %c0_i32_0 = arith.constant 0 : i32
    %c0_i32_1 = arith.constant 0 : i32
    return %c0_i32, %c0_i32_0 : i32, i32
  }
  func.func @transform_2(%arg0: i32) -> (i32, i32, i32) {
    %c1_i32 = arith.constant 1 : i32
    %0 = arith.subi %arg0, %c1_i32 : i32
    %c0_i32 = arith.constant 0 : i32
    %1 = arith.maxsi %0, %c0_i32 : i32
    %c0_i32_0 = arith.constant 0 : i32
    %c0_i32_1 = arith.constant 0 : i32
    %c0_i32_2 = arith.constant 0 : i32
    return %1, %c0_i32_0, %c0_i32_1 : i32, i32, i32
  }
  func.func @transform_3(%arg0: i32) -> (i32, i32) {
    %c0_i32 = arith.constant 0 : i32
    %c0_i32_0 = arith.constant 0 : i32
    %c0_i32_1 = arith.constant 0 : i32
    return %c0_i32, %c0_i32_0 : i32, i32
  }
  func.func @transform_4(%arg0: i32) -> (i32, i32, i32) {
    %c0_i32 = arith.constant 0 : i32
    %c0_i32_0 = arith.constant 0 : i32
    %c0_i32_1 = arith.constant 0 : i32
    %c0_i32_2 = arith.constant 0 : i32
    return %c0_i32, %c0_i32_0, %c0_i32_1 : i32, i32, i32
  }
  func.func @transform_5(%arg0: i32) -> (i32, i32, i32) {
    %c0_i32 = arith.constant 0 : i32
    %c0_i32_0 = arith.constant 0 : i32
    %c0_i32_1 = arith.constant 0 : i32
    %c0_i32_2 = arith.constant 0 : i32
    return %c0_i32, %c0_i32_0, %c0_i32_1 : i32, i32, i32
  }
  func.func @transform_6(%arg0: i32) -> (i32, i32) {
    %c0_i32 = arith.constant 0 : i32
    %c0_i32_0 = arith.constant 0 : i32
    %c0_i32_1 = arith.constant 0 : i32
    return %c0_i32, %c0_i32_0 : i32, i32
  }
  func.func @transform_7(%arg0: i32) -> (i32, i32) {
    %c0_i32 = arith.constant 0 : i32
    %c0_i32_0 = arith.constant 0 : i32
    %c0_i32_1 = arith.constant 0 : i32
    return %c0_i32, %c0_i32_0 : i32, i32
  }
  func.func @transform_8(%arg0: i32) -> (i32, i32) {
    %c0_i32 = arith.constant 0 : i32
    %c0_i32_0 = arith.constant 0 : i32
    %c0_i32_1 = arith.constant 0 : i32
    return %c0_i32, %c0_i32_0 : i32, i32
  }
}

</mosaic_0001>

<llo_original>
// kernel: tpu_custom_call.1
$region0: #{tpu_custom_call.1}
  #allocation0 [shape = 'u32[]', space=smem, size = 0x4, offset = 0x4, fixed_abs, tag = 'smem constant byte address 0x4 - core index']
  #allocation1 [shape = 'u32[144,128]{1,0:T(1,128)}', space=vmem, size = 0x12000, scoped, tag = 'internal scratch']
  #allocation2 [shape = 'f32[16,256]{1,0:T(8,128)}', space=vmem, size = 0x4000, scoped, tag = 'scratch operand']
  %s0 = inlined_call_operand.hbm [shape: f32[16,256], index: 0, kind: input, shape index: {}]
  %s1 = inlined_call_operand.hbm [shape: s8[256,256], index: 1, kind: input, shape index: {}]
  %s2 = inlined_call_operand.hbm [shape: s8[3,256,256], index: 2, kind: input, shape index: {}]
  %s3 = inlined_call_operand.hbm [shape: s8[256,128], index: 3, kind: input, shape index: {}]
  %s4 = inlined_call_operand.vmem [shape: f32[4,1,256], index: 4, kind: input, shape index: {}]
  %s5 = inlined_call_operand.vmem [shape: f32[4,1,256], index: 5, kind: input, shape index: {}]
  %s6 = inlined_call_operand.vmem [shape: f32[1,128], index: 6, kind: input, shape index: {}]
  %s7 = inlined_call_operand.vmem [shape: f32[1,128], index: 7, kind: input, shape index: {}]
  %s8 = inlined_call_operand.hbm [shape: f32[16,128], index: 8, kind: output, shape index: {}]
  %s9 = sld [smem:[#allocation0]]
  $region93: #{tpu_custom_call.1} parent=0
    _
  %s11 = ssub.s32 1, %s9
  %s12 = scalar_select 0, %s11, %s9
  $region1: #{tpu_custom_call.1} parent=0
    #allocation3 [shape = 'u8[16384]{0}', space=vmem, size = 0x4000, scoped, tag = 'input window, operand 0, single buffered']
    #allocation4 [shape = 's32[2]{0}', space=sflag, size = 0x8, scoped, tag = 'scoped memory for tpu_custom_call.1']
    #allocation5 [shape = 's32[2]{0}', space=sflag, size = 0x8, scoped, tag = 'scoped memory for tpu_custom_call.1']
    #allocation6 [shape = 'u8[65536]{0}', space=vmem, size = 0x10000, scoped, tag = 'input window, operand 1, single buffered']
    #allocation7 [shape = 's32[1]{0}', space=sflag, size = 0x4, scoped, tag = 'scoped memory for tpu_custom_call.1']
    #allocation8 [shape = 'u8[131072]{0}', space=vmem, size = 0x20000, scoped, tag = 'input window, operand 2']
    #allocation9 [shape = 'u8[32768]{0}', space=vmem, size = 0x8000, scoped, tag = 'input window, operand 3, single buffered']
    #allocation10 [shape = 'u8[8192]{0}', space=vmem, size = 0x2000, scoped, tag = 'output window, operand 0, single buffered']
    %13 = vsyncpa [#allocation4], 0
    %14 = vsyncpa [#allocation7], 0
    %15 = vsyncpa [#allocation5], 0
    loop: start=0, step=1, limit=6
    $region2: #{tpu_custom_call.1} parent=1 // loop_pre_header
      _
    $region3: #{tpu_custom_call.1} parent=1 // loop_header
      %s17 = sphi 0, %s21
      %p18 = scmp.ge.s32.totalorder %s17, 6
      %s25 = sphi 0, %s25
      %s27 = sphi 0, %s25
      %s28 = sphi 0, %s27
      %s42 = sphi 0, %s28
      %s46 = sphi 0, %s46
      %s48 = sphi 0, %s46
      %s49 = sphi 0, %s48
      %s63 = sphi 0, %s49
      %s75 = sphi 0, %s77
      %s78 = sphi 0, %s75
      %s79 = sphi 0, %s78
      %s95 = sphi 0, %s79
      %s99 = sphi 0, %s99
      %s101 = sphi 0, %s99
      %s102 = sphi 0, %s101
      %s116 = sphi 0, %s102
      %s120 = sphi 0, %s120
      %s122 = sphi 0, %s120
      %s123 = sphi 0, %s122
      %s137 = sphi 0, %s123
      %s141 = sphi 0, %s141
      %s143 = sphi 0, %s141
      %s144 = sphi 0, %s143
      %s158 = sphi 0, %s144
      %s162 = sphi 0, %s162
      %s164 = sphi 0, %s162
      %s165 = sphi 0, %s164
      %s179 = sphi 0, %s165
      %s183 = sphi 0, %s183
      %s185 = sphi 0, %s183
      %s186 = sphi 0, %s185
      %s200 = sphi 0, %s186
      %s204 = sphi 0, %s204
      %s206 = sphi 0, %s204
      %s207 = sphi 0, %s206
      %s221 = sphi 0, %s207
    $region4: #{tpu_custom_call.1} parent=1 // loop_header_branch
      %20 = sbr.rel (%p18) target = $region8
    $region5: #{tpu_custom_call.1} parent=1 // loop_body
      %s22 = ssub.s32 %s17, 1
      %s23 = ssub.s32 %s17, 2
      %s24 = sadd.s32 %s17, 1
      %s26 = sadd.s32 %s25, 1
      %p29 = scmp.eq.s32.totalorder %s17, 3
      %p30 = scmp.ne.s32.totalorder %s25, %s27
      %p31 = scmp.eq.s32.totalorder %s17, 0
      %p32 = por %p30, %p31
      %p33 = scmp.ne.s32.totalorder %s25, %s27
      %p34 = scmp.eq.s32.totalorder %s22, 3
      %p35 = por %p33, %p34
      %p36 = scmp.ne.s32.totalorder %s27, %s28
      %p37 = scmp.eq.s32.totalorder %s22, 0
      %p38 = por %p36, %p37
      %p39 = scmp.ne.s32.totalorder %s27, %s28
      %p40 = scmp.eq.s32.totalorder %s23, 3
      %p41 = por %p39, %p40
      %p43 = scmp.ne.s32.totalorder %s28, %s42
      %p44 = scmp.eq.s32.totalorder %s23, 0
      %p45 = por %p43, %p44
      %s47 = sadd.s32 %s46, 1
      %p50 = scmp.eq.s32.totalorder %s17, 3
      %p51 = scmp.ne.s32.totalorder %s46, %s48
      %p52 = scmp.eq.s32.totalorder %s17, 0
      %p53 = por %p51, %p52
      %p54 = scmp.ne.s32.totalorder %s46, %s48
      %p55 = scmp.eq.s32.totalorder %s22, 3
      %p56 = por %p54, %p55
      %p57 = scmp.ne.s32.totalorder %s48, %s49
      %p58 = scmp.eq.s32.totalorder %s22, 0
      %p59 = por %p57, %p58
      %p60 = scmp.ne.s32.totalorder %s48, %s49
      %p61 = scmp.eq.s32.totalorder %s23, 3
      %p62 = por %p60, %p61
      %p64 = scmp.ne.s32.totalorder %s49, %s63
      %p65 = scmp.eq.s32.totalorder %s23, 0
      %p66 = por %p64, %p65
      %s67 = ssub.s32 %s17, 1
      %p68 = scmp.gt.s32.totalorder %s67, 0
      %s69 = scalar_select %p68, %s67, 0
      %s70 = ssub.s32 %s24, 1
      %p71 = scmp.gt.s32.totalorder %s70, 0
      %s72 = scalar_select %p71, %s70, 0
      %s73 = ssub.s32 %s69, %s72
      %p74 = scmp.eq.s32.totalorder %s73, 0
      %s76 = sadd.s32 %s75, 1
      %s77 = scalar_select %p74, %s75, %s76
      %p80 = pneg %p74
      %p81 = scmp.eq.s32.totalorder %s17, 3
      %p82 = por %p80, %p81
      %p83 = scmp.ne.s32.totalorder %s75, %s78
      %p84 = scmp.eq.s32.totalorder %s17, 0
      %p85 = por %p83, %p84
      %p86 = scmp.ne.s32.totalorder %s75, %s78
      %p87 = scmp.eq.s32.totalorder %s22, 3
      %p88 = por %p86, %p87
      %p89 = scmp.ne.s32.totalorder %s78, %s79
      %p90 = scmp.eq.s32.totalorder %s22, 0
      %p91 = por %p89, %p90
      %p92 = scmp.ne.s32.totalorder %s78, %s79
      %p93 = scmp.eq.s32.totalorder %s23, 3
      %p94 = por %p92, %p93
      %p96 = scmp.ne.s32.totalorder %s79, %s95
      %p97 = scmp.eq.s32.totalorder %s23, 0
      %p98 = por %p96, %p97
      %s100 = sadd.s32 %s99, 1
      %p103 = scmp.eq.s32.totalorder %s17, 3
      %p104 = scmp.ne.s32.totalorder %s99, %s101
      %p105 = scmp.eq.s32.totalorder %s17, 0
      %p106 = por %p104, %p105
      %p107 = scmp.ne.s32.totalorder %s99, %s101
      %p108 = scmp.eq.s32.totalorder %s22, 3
      %p109 = por %p107, %p108
      %p110 = scmp.ne.s32.totalorder %s101, %s102
      %p111 = scmp.eq.s32.totalorder %s22, 0
      %p112 = por %p110, %p111
      %p113 = scmp.ne.s32.totalorder %s101, %s102
      %p114 = scmp.eq.s32.totalorder %s23, 3
      %p115 = por %p113, %p114
      %p117 = scmp.ne.s32.totalorder %s102, %s116
      %p118 = scmp.eq.s32.totalorder %s23, 0
      %p119 = por %p117, %p118
      %s121 = sadd.s32 %s120, 1
      %p124 = scmp.eq.s32.totalorder %s17, 3
      %p125 = scmp.ne.s32.totalorder %s120, %s122
      %p126 = scmp.eq.s32.totalorder %s17, 0
      %p127 = por %p125, %p126
      %p128 = scmp.ne.s32.totalorder %s120, %s122
      %p129 = scmp.eq.s32.totalorder %s22, 3
      %p130 = por %p128, %p129
      %p131 = scmp.ne.s32.totalorder %s122, %s123
      %p132 = scmp.eq.s32.totalorder %s22, 0
      %p133 = por %p131, %p132
      %p134 = scmp.ne.s32.totalorder %s122, %s123
      %p135 = scmp.eq.s32.totalorder %s23, 3
      %p136 = por %p134, %p135
      %p138 = scmp.ne.s32.totalorder %s123, %s137
      %p139 = scmp.eq.s32.totalorder %s23, 0
      %p140 = por %p138, %p139
      %s142 = sadd.s32 %s141, 1
      %p145 = scmp.eq.s32.totalorder %s17, 3
      %p146 = scmp.ne.s32.totalorder %s141, %s143
      %p147 = scmp.eq.s32.totalorder %s17, 0
      %p148 = por %p146, %p147
      %p149 = scmp.ne.s32.totalorder %s141, %s143
      %p150 = scmp.eq.s32.totalorder %s22, 3
      %p151 = por %p149, %p150
      %p152 = scmp.ne.s32.totalorder %s143, %s144
      %p153 = scmp.eq.s32.totalorder %s22, 0
      %p154 = por %p152, %p153
      %p155 = scmp.ne.s32.totalorder %s143, %s144
      %p156 = scmp.eq.s32.totalorder %s23, 3
      %p157 = por %p155, %p156
      %p159 = scmp.ne.s32.totalorder %s144, %s158
      %p160 = scmp.eq.s32.totalorder %s23, 0
      %p161 = por %p159, %p160
      %s163 = sadd.s32 %s162, 1
      %p166 = scmp.eq.s32.totalorder %s17, 3
      %p167 = scmp.ne.s32.totalorder %s162, %s164
      %p168 = scmp.eq.s32.totalorder %s17, 0
      %p169 = por %p167, %p168
      %p170 = scmp.ne.s32.totalorder %s162, %s164
      %p171 = scmp.eq.s32.totalorder %s22, 3
      %p172 = por %p170, %p171
      %p173 = scmp.ne.s32.totalorder %s164, %s165
      %p174 = scmp.eq.s32.totalorder %s22, 0
      %p175 = por %p173, %p174
      %p176 = scmp.ne.s32.totalorder %s164, %s165
      %p177 = scmp.eq.s32.totalorder %s23, 3
      %p178 = por %p176, %p177
      %p180 = scmp.ne.s32.totalorder %s165, %s179
      %p181 = scmp.eq.s32.totalorder %s23, 0
      %p182 = por %p180, %p181
      %s184 = sadd.s32 %s183, 1
      %p187 = scmp.eq.s32.totalorder %s17, 3
      %p188 = scmp.ne.s32.totalorder %s183, %s185
      %p189 = scmp.eq.s32.totalorder %s17, 0
      %p190 = por %p188, %p189
      %p191 = scmp.ne.s32.totalorder %s183, %s185
      %p192 = scmp.eq.s32.totalorder %s22, 3
      %p193 = por %p191, %p192
      %p194 = scmp.ne.s32.totalorder %s185, %s186
      %p195 = scmp.eq.s32.totalorder %s22, 0
      %p196 = por %p194, %p195
      %p197 = scmp.ne.s32.totalorder %s185, %s186
      %p198 = scmp.eq.s32.totalorder %s23, 3
      %p199 = por %p197, %p198
      %p201 = scmp.ne.s32.totalorder %s186, %s200
      %p202 = scmp.eq.s32.totalorder %s23, 0
      %p203 = por %p201, %p202
      %s205 = sadd.s32 %s204, 1
      %p208 = scmp.eq.s32.totalorder %s17, 3
      %p209 = scmp.ne.s32.totalorder %s204, %s206
      %p210 = scmp.eq.s32.totalorder %s17, 0
      %p211 = por %p209, %p210
      %p212 = scmp.ne.s32.totalorder %s204, %s206
      %p213 = scmp.eq.s32.totalorder %s22, 3
      %p214 = por %p212, %p213
      %p215 = scmp.ne.s32.totalorder %s206, %s207
      %p216 = scmp.eq.s32.totalorder %s22, 0
      %p217 = por %p215, %p216
      %p218 = scmp.ne.s32.totalorder %s206, %s207
      %p219 = scmp.eq.s32.totalorder %s23, 3
      %p220 = por %p218, %p219
      %p222 = scmp.ne.s32.totalorder %s207, %s221
      %p223 = scmp.eq.s32.totalorder %s23, 0
      %p224 = por %p222, %p223
      %p225 = scmp.le.s32.totalorder 1, %s17
      %p226 = scmp.lt.s32.totalorder %s17, 5
      %p227 = pnand %p225, %p226
      %p228 = pneg %p227
      // Predicated region
      $region9: #{tpu_custom_call.1} parent=5 // pred_check
        _
      $region10: #{tpu_custom_call.1} parent=5 // pred_check_branch
        %230 = sbr.rel (%p227) target = $region12
      $region11: #{tpu_custom_call.1} parent=5 // pred_region
        %s231 = ssub.s32 %s17, 1
        // Predicated region
        $region13: #{tpu_custom_call.1} parent=11 // pred_check
          %p232 = pneg %p38
        $region14: #{tpu_custom_call.1} parent=11 // pred_check_branch
          %234 = sbr.rel (%p232) target = $region16
        $region15: #{tpu_custom_call.1} parent=11 // pred_region
          %s236 = ssub.s32 512, 512
          %237 = vsyncadd [#allocation4], %s236
          %s238 = sshll.u32 [#allocation3], 4
          %s239 = int_to_ptr.vmem [resolvable:$true] %s238
          %244 = dma.hbm_to_vmem [thread:$0]  %s0, 512, %s239, [#allocation4], 256, 256, 16
        $region16: #{tpu_custom_call.1} parent=11 // pred_fallthru
          _
        // Predicated region
        $region17: #{tpu_custom_call.1} parent=11 // pred_check
          %p245 = pneg %p59
        $region18: #{tpu_custom_call.1} parent=11 // pred_check_branch
          %247 = sbr.rel (%p245) target = $region20
        $region19: #{tpu_custom_call.1} parent=11 // pred_region
          %s249 = ssub.s32 2048, 2048
          %250 = vsyncadd [#allocation7], %s249
          %s251 = sshll.u32 [#allocation6], 4
          %s252 = int_to_ptr.vmem [resolvable:$true] %s251
          %257 = dma.hbm_to_vmem [thread:$0]  %s1, 2048, %s252, [#allocation7], 256, 256, 16
        $region20: #{tpu_custom_call.1} parent=11 // pred_fallthru
          _
        // Predicated region
        $region21: #{tpu_custom_call.1} parent=11 // pred_check
          %p258 = pneg %p112
        $region22: #{tpu_custom_call.1} parent=11 // pred_check_branch
          %260 = sbr.rel (%p258) target = $region24
        $region23: #{tpu_custom_call.1} parent=11 // pred_region
          %s262 = ssub.s32 1024, 1024
          %263 = vsyncadd [#allocation7], %s262
          %s264 = sshll.u32 [#allocation9], 4
          %s265 = int_to_ptr.vmem [resolvable:$true] %s264
          %270 = dma.hbm_to_vmem [thread:$0]  %s3, 1024, %s265, [#allocation7], 128, 128, 8
        $region24: #{tpu_custom_call.1} parent=11 // pred_fallthru
          _
        // Predicated region
        $region25: #{tpu_custom_call.1} parent=11 // pred_check
          %p271 = pneg %p133
        $region26: #{tpu_custom_call.1} parent=11 // pred_check_branch
          %273 = sbr.rel (%p271) target = $region28
        $region27: #{tpu_custom_call.1} parent=11 // pred_region
          _
        $region28: #{tpu_custom_call.1} parent=11 // pred_fallthru
          _
        // Predicated region
        $region29: #{tpu_custom_call.1} parent=11 // pred_check
          %p274 = pneg %p154
        $region30: #{tpu_custom_call.1} parent=11 // pred_check_branch
          %276 = sbr.rel (%p274) target = $region32
        $region31: #{tpu_custom_call.1} parent=11 // pred_region
          _
        $region32: #{tpu_custom_call.1} parent=11 // pred_fallthru
          _
        // Predicated region
        $region33: #{tpu_custom_call.1} parent=11 // pred_check
          %p277 = pneg %p175
        $region34: #{tpu_custom_call.1} parent=11 // pred_check_branch
          %279 = sbr.rel (%p277) target = $region36
        $region35: #{tpu_custom_call.1} parent=11 // pred_region
          _
        $region36: #{tpu_custom_call.1} parent=11 // pred_fallthru
          _
        // Predicated region
        $region37: #{tpu_custom_call.1} parent=11 // pred_check
          %p280 = pneg %p196
        $region38: #{tpu_custom_call.1} parent=11 // pred_check_branch
          %282 = sbr.rel (%p280) target = $region40
        $region39: #{tpu_custom_call.1} parent=11 // pred_region
          _
        $region40: #{tpu_custom_call.1} parent=11 // pred_fallthru
          _
      $region12: #{tpu_custom_call.1} parent=5 // pred_fallthru
        _
      %p283 = scmp.lt.s32.totalorder %s17, 4
      // Predicated region
      $region41: #{tpu_custom_call.1} parent=5 // pred_check
        %p284 = pneg %p283
      $region42: #{tpu_custom_call.1} parent=5 // pred_check_branch
        %286 = sbr.rel (%p284) target = $region44
      $region43: #{tpu_custom_call.1} parent=5 // pred_region
        // Predicated region
        $region45: #{tpu_custom_call.1} parent=43 // pred_check
          %p287 = pneg %p85
        $region46: #{tpu_custom_call.1} parent=43 // pred_check_branch
          %289 = sbr.rel (%p287) target = $region48
        $region47: #{tpu_custom_call.1} parent=43 // pred_region
          %s290 = sand.u32 %s17, 1
          %s291 = scalar_lea.sflag [#allocation4], %s290
          %s292 = sand.u32 %s75, 1
          %s293 = smul.addr %s292, 128
          %s294 = scalar_lea.vmem [#allocation8], %s293
          %s295 = ssub.s32 %s17, 1
          %p296 = scmp.gt.s32.totalorder %s295, 0
          %s297 = scalar_select %p296, %s295, 0
          %s299 = ssub.s32 2048, 2048
          %300 = vsyncadd %s291, %s299
          %s301 = smul.addr %s297, 16
          %s302 = smul.addr %s301, 128
          %s303 = scalar_lea.hbm %s2, %s302
          %s304 = sshll.u32 %s294, 4
          %s305 = int_to_ptr.vmem [resolvable:$true] %s304
          %310 = dma.hbm_to_vmem [thread:$0]  %s303, 2048, %s305, %s291, 256, 256, 16
        $region48: #{tpu_custom_call.1} parent=43 // pred_fallthru
          _
      $region44: #{tpu_custom_call.1} parent=5 // pred_fallthru
        _
      %p311 = scmp.le.s32.totalorder 1, %s17
      %p312 = scmp.lt.s32.totalorder %s17, 5
      %p313 = pnand %p311, %p312
      %p314 = pneg %p313
      // Predicated region
      $region49: #{tpu_custom_call.1} parent=5 // pred_check
        _
      $region50: #{tpu_custom_call.1} parent=5 // pred_check_branch
        %316 = sbr.rel (%p313) target = $region52
      $region51: #{tpu_custom_call.1} parent=5 // pred_region
        %s317 = ssub.s32 %s17, 1
        // Predicated region
        $region53: #{tpu_custom_call.1} parent=51 // pred_check
          %p318 = pneg %p38
        $region54: #{tpu_custom_call.1} parent=51 // pred_check_branch
          %320 = sbr.rel (%p318) target = $region56
        $region55: #{tpu_custom_call.1} parent=51 // pred_region
          %321 = dma.done [#allocation4], 512
        $region56: #{tpu_custom_call.1} parent=51 // pred_fallthru
          _
        // Predicated region
        $region57: #{tpu_custom_call.1} parent=51 // pred_check
          %p322 = pneg %p59
        $region58: #{tpu_custom_call.1} parent=51 // pred_check_branch
          %324 = sbr.rel (%p322) target = $region60
        $region59: #{tpu_custom_call.1} parent=51 // pred_region
          %325 = dma.done [#allocation7], 2048
        $region60: #{tpu_custom_call.1} parent=51 // pred_fallthru
          _
        %s326 = sand.u32 %s22, 1
        %s327 = scalar_lea.sflag [#allocation4], %s326
        %s328 = sand.u32 %s78, 1
        %s329 = smul.addr %s328, 128
        %s330 = scalar_lea.vmem [#allocation8], %s329
        // Predicated region
        $region61: #{tpu_custom_call.1} parent=51 // pred_check
          %p331 = pneg %p91
        $region62: #{tpu_custom_call.1} parent=51 // pred_check_branch
          %333 = sbr.rel (%p331) target = $region64
        $region63: #{tpu_custom_call.1} parent=51 // pred_region
          %334 = dma.done %s327, 2048
        $region64: #{tpu_custom_call.1} parent=51 // pred_fallthru
          _
        // Predicated region
        $region65: #{tpu_custom_call.1} parent=51 // pred_check
          %p335 = pneg %p112
        $region66: #{tpu_custom_call.1} parent=51 // pred_check_branch
          %337 = sbr.rel (%p335) target = $region68
        $region67: #{tpu_custom_call.1} parent=51 // pred_region
          %338 = dma.done [#allocation7], 1024
        $region68: #{tpu_custom_call.1} parent=51 // pred_fallthru
          _
        %p339 = pneg %p38
        %p340 = pneg %p35
        %p341 = pneg %p59
        %p342 = pneg %p56
        %s343 = sand.u32 %s22, 1
        %s344 = scalar_lea.sflag [#allocation4], %s343
        %s345 = sand.u32 %s78, 1
        %s346 = smul.addr %s345, 128
        %s347 = scalar_lea.vmem [#allocation8], %s346
        %p348 = pneg %p91
        %p349 = pneg %p88
        %p350 = pneg %p112
        %p351 = pneg %p109
        %p352 = pneg %p133
        %p353 = pneg %p130
        %p354 = pneg %p154
        %p355 = pneg %p151
        %p356 = pneg %p175
        %p357 = pneg %p172
        %p358 = pneg %p196
        %p359 = pneg %p193
        %p360 = pneg %p217
        %p361 = pneg %p214
        %s362 = ssub.s32 %s22, 1
        %p363 = scmp.gt.s32.totalorder %s362, 0
        %s364 = scalar_select %p363, %s362, 0
        %p366 = scmp.eq.s32.totalorder %s22, 0
        // Predicated region
        $region69: #{tpu_custom_call.1} parent=51 // pred_check
          %p367 = pneg %p366
        $region70: #{tpu_custom_call.1} parent=51 // pred_check_branch
          %369 = sbr.rel (%p367) target = $region72
        $region71: #{tpu_custom_call.1} parent=51 // pred_region
          %v370 = vld [vmem:[#allocation6] sm:$0xff]
          %v371 = vld [vmem:[#allocation6 + $0x8] sm:$0xff]
          %v372 = vld [vmem:[#allocation6 + $0x10] sm:$0xff]
          %v373 = vld [vmem:[#allocation6 + $0x18] sm:$0xff]
          %v374 = vld [vmem:[#allocation6 + $0x20] sm:$0xff]
          %v375 = vld [vmem:[#allocation6 + $0x28] sm:$0xff]
          %v376 = vld [vmem:[#allocation6 + $0x30] sm:$0xff]
          %v377 = vld [vmem:[#allocation6 + $0x38] sm:$0xff]
          %v378 = vld [vmem:[#allocation6 + $0x40] sm:$0xff]
          %v379 = vld [vmem:[#allocation6 + $0x48] sm:$0xff]
          %v380 = vld [vmem:[#allocation6 + $0x50] sm:$0xff]
          %v381 = vld [vmem:[#allocation6 + $0x58] sm:$0xff]
          %v382 = vld [vmem:[#allocation6 + $0x60] sm:$0xff]
          %v383 = vld [vmem:[#allocation6 + $0x68] sm:$0xff]
          %v384 = vld [vmem:[#allocation6 + $0x70] sm:$0xff]
          %v385 = vld [vmem:[#allocation6 + $0x78] sm:$0xff]
          %v386 = vunpack.c.l.s8.bf16 %v370
          %v387 = vunpack.c.l.s8.bf16 %v371
          %v388 = vunpack.c.h.s8.bf16 %v370
          %v389 = vunpack.c.h.s8.bf16 %v371
          %v390 = vunpack.c.l.s8.bf16 %v372
          %v391 = vunpack.c.l.s8.bf16 %v373
          %v392 = vunpack.c.h.s8.bf16 %v372
          %v393 = vunpack.c.h.s8.bf16 %v373
          %v394 = vunpack.c.l.s8.bf16 %v374
          %v395 = vunpack.c.l.s8.bf16 %v375
          %v396 = vunpack.c.h.s8.bf16 %v374
          %v397 = vunpack.c.h.s8.bf16 %v375
          %v398 = vunpack.c.l.s8.bf16 %v376
          %v399 = vunpack.c.l.s8.bf16 %v377
          %v400 = vunpack.c.h.s8.bf16 %v376
          %v401 = vunpack.c.h.s8.bf16 %v377
          %v402 = vunpack.c.l.s8.bf16 %v378
          %v403 = vunpack.c.l.s8.bf16 %v379
          %v404 = vunpack.c.h.s8.bf16 %v378
          %v405 = vunpack.c.h.s8.bf16 %v379
          %v406 = vunpack.c.l.s8.bf16 %v380
          %v407 = vunpack.c.l.s8.bf16 %v381
          %v408 = vunpack.c.h.s8.bf16 %v380
          %v409 = vunpack.c.h.s8.bf16 %v381
          %v410 = vunpack.c.l.s8.bf16 %v382
          %v411 = vunpack.c.l.s8.bf16 %v383
          %v412 = vunpack.c.h.s8.bf16 %v382
          %v413 = vunpack.c.h.s8.bf16 %v383
          %v414 = vunpack.c.l.s8.bf16 %v384
          %v415 = vunpack.c.l.s8.bf16 %v385
          %v416 = vunpack.c.h.s8.bf16 %v384
          %v417 = vunpack.c.h.s8.bf16 %v385
          %v418 = vld [vmem:[#allocation3] sm:$0xff]
          %v419 = vld [vmem:[#allocation3 + $0x8] sm:$0xff]
          %v420 = vld [vmem:[#allocation3 + $0x10] sm:$0xff]
          %v421 = vld [vmem:[#allocation3 + $0x18] sm:$0xff]
          %v422 = vpack.c.bf16 %v420, %v418
          %v423 = vpack.c.bf16 %v421, %v419
          %424 = vmatprep.subr.bf16.mxu0 %v387
          %425 = vmatpush1.bf16.msra.mxu0 %v386
          %426 = vmatprep.subr.bf16.mxu0 %v389
          %427 = vmatpush1.bf16.msra.mxu0 %v388
          %428 = vmatprep.subr.bf16.mxu0 %v391
          %429 = vmatpush1.bf16.msra.mxu0 %v390
          %430 = vmatprep.subr.bf16.mxu0 %v393
          %431 = vmatpush1.bf16.msra.mxu0 %v392
          %432 = vmatprep.subr.bf16.mxu0 %v395
          %433 = vmatpush1.bf16.msra.mxu0 %v394
          %434 = vmatprep.subr.bf16.mxu0 %v397
          %435 = vmatpush1.bf16.msra.mxu0 %v396
          %436 = vmatprep.subr.bf16.mxu0 %v399
          %437 = vmatpush1.bf16.msra.mxu0 %v398
          %438 = vmatprep.subr.bf16.mxu0 %v401
          %439 = vmatpush1.bf16.msra.mxu0 %v400
          %440 = vmatprep.subr.bf16.mxu0 %v403
          %441 = vmatpush1.bf16.msra.mxu0 %v402
          %442 = vmatprep.subr.bf16.mxu0 %v405
          %443 = vmatpush1.bf16.msra.mxu0 %v404
          %444 = vmatprep.subr.bf16.mxu0 %v407
          %445 = vmatpush1.bf16.msra.mxu0 %v406
          %446 = vmatprep.subr.bf16.mxu0 %v409
          %447 = vmatpush1.bf16.msra.mxu0 %v408
          %448 = vmatprep.subr.bf16.mxu0 %v411
          %449 = vmatpush1.bf16.msra.mxu0 %v410
          %450 = vmatprep.subr.bf16.mxu0 %v413
          %451 = vmatpush1.bf16.msra.mxu0 %v412
          %452 = vmatprep.subr.bf16.mxu0 %v415
          %453 = vmatpush1.bf16.msra.mxu0 %v414
          %454 = vmatprep.subr.bf16.mxu0 %v417
          %455 = vmatpush1.bf16.msra.mxu0 %v416
          %456 = vmatprep.mubr.bf16.mxu0 %v423
          %457 = vmatmul.mubr.bf16.gmra.mrb[0].mxu0 %v422
          %v458 = vpop.f32.mrb[0].mxu0
          %v459 = vadd.f32 0.0, %v458
          %v460 = vpop.f32.mrb[0].mxu0
          %v461 = vadd.f32 0.0, %v460
          %v462 = vpop.f32.mrb[0].mxu0
          %v463 = vadd.f32 0.0, %v462
          %v464 = vpop.f32.mrb[0].mxu0
          %v465 = vadd.f32 0.0, %v464
          %466 = vdwg.mxu0
          %v467 = vld [vmem:[%s4] sm:$0x3]
          %v469 = vlaneseq
          %v470 = vshrl.u32 %v469, 7
          %v471 = vsub.s32 0, %v470
          %v472 = vrot.slane %v467, %v471
          %v473 = vlaneseq
          %v474 = vshrl.u32 %v473, 7
          %v475 = vsub.s32 1, %v474
          %v476 = vrot.slane %v467, %v475
          %v479 = vmul.f32 %v459, %v472
          %v480 = vmul.f32 %v461, %v476
          %v481 = vmul.f32 %v463, %v472
          %v482 = vmul.f32 %v465, %v476
          %v483 = vld [vmem:[%s5] sm:$0x3]
          %v485 = vlaneseq
          %v486 = vshrl.u32 %v485, 7
          %v487 = vsub.s32 0, %v486
          %v488 = vrot.slane %v483, %v487
          %v489 = vlaneseq
          %v490 = vshrl.u32 %v489, 7
          %v491 = vsub.s32 1, %v490
          %v492 = vrot.slane %v483, %v491
          %v495 = vadd.f32 %v479, %v488
          %v496 = vadd.f32 %v480, %v492
          %v497 = vadd.f32 %v481, %v488
          %v498 = vadd.f32 %v482, %v492
          %v499 = vmul.f32 %v495, 0.2
          %v500 = vmul.f32 %v496, 0.2
          %v501 = vmul.f32 %v497, 0.2
          %v502 = vmul.f32 %v498, 0.2
          %v503 = vmax.f32 %v495, %v499
          %v504 = vmax.f32 %v496, %v500
          %v505 = vmax.f32 %v497, %v501
          %v506 = vmax.f32 %v498, %v502
          %507 = vst [vmem:[#allocation2] sm:$0xff] %v503
          %508 = vst [vmem:[#allocation2 + $0x8] sm:$0xff] %v504
          %509 = vst [vmem:[#allocation2 + $0x10] sm:$0xff] %v505
          %510 = vst [vmem:[#allocation2 + $0x18] sm:$0xff] %v506
        $region72: #{tpu_custom_call.1} parent=51 // pred_fallthru
          _
        %p511 = scmp.gt.s32.totalorder %s22, 0
        // Predicated region
        $region73: #{tpu_custom_call.1} parent=51 // pred_check
          %p512 = pneg %p511
        $region74: #{tpu_custom_call.1} parent=51 // pred_check_branch
          %514 = sbr.rel (%p512) target = $region76
        $region75: #{tpu_custom_call.1} parent=51 // pred_region
          %v515 = vld [vmem:[%s330] sm:$0xff]
          %v516 = vld [vmem:[%s330 + $0x8] sm:$0xff]
          %v517 = vld [vmem:[%s330 + $0x10] sm:$0xff]
          %v518 = vld [vmem:[%s330 + $0x18] sm:$0xff]
          %v519 = vld [vmem:[%s330 + $0x20] sm:$0xff]
          %v520 = vld [vmem:[%s330 + $0x28] sm:$0xff]
          %v521 = vld [vmem:[%s330 + $0x30] sm:$0xff]
          %v522 = vld [vmem:[%s330 + $0x38] sm:$0xff]
          %v523 = vld [vmem:[%s330 + $0x40] sm:$0xff]
          %v524 = vld [vmem:[%s330 + $0x48] sm:$0xff]
          %v525 = vld [vmem:[%s330 + $0x50] sm:$0xff]
          %v526 = vld [vmem:[%s330 + $0x58] sm:$0xff]
          %v527 = vld [vmem:[%s330 + $0x60] sm:$0xff]
          %v528 = vld [vmem:[%s330 + $0x68] sm:$0xff]
          %v529 = vld [vmem:[%s330 + $0x70] sm:$0xff]
          %v530 = vld [vmem:[%s330 + $0x78] sm:$0xff]
          %v531 = vunpack.c.l.s8.bf16 %v515
          %v532 = vunpack.c.l.s8.bf16 %v516
          %v533 = vunpack.c.h.s8.bf16 %v515
          %v534 = vunpack.c.h.s8.bf16 %v516
          %v535 = vunpack.c.l.s8.bf16 %v517
          %v536 = vunpack.c.l.s8.bf16 %v518
          %v537 = vunpack.c.h.s8.bf16 %v517
          %v538 = vunpack.c.h.s8.bf16 %v518
          %v539 = vunpack.c.l.s8.bf16 %v519
          %v540 = vunpack.c.l.s8.bf16 %v520
          %v541 = vunpack.c.h.s8.bf16 %v519
          %v542 = vunpack.c.h.s8.bf16 %v520
          %v543 = vunpack.c.l.s8.bf16 %v521
          %v544 = vunpack.c.l.s8.bf16 %v522
          %v545 = vunpack.c.h.s8.bf16 %v521
          %v546 = vunpack.c.h.s8.bf16 %v522
          %v547 = vunpack.c.l.s8.bf16 %v523
          %v548 = vunpack.c.l.s8.bf16 %v524
          %v549 = vunpack.c.h.s8.bf16 %v523
          %v550 = vunpack.c.h.s8.bf16 %v524
          %v551 = vunpack.c.l.s8.bf16 %v525
          %v552 = vunpack.c.l.s8.bf16 %v526
          %v553 = vunpack.c.h.s8.bf16 %v525
          %v554 = vunpack.c.h.s8.bf16 %v526
          %v555 = vunpack.c.l.s8.bf16 %v527
          %v556 = vunpack.c.l.s8.bf16 %v528
          %v557 = vunpack.c.h.s8.bf16 %v527
          %v558 = vunpack.c.h.s8.bf16 %v528
          %v559 = vunpack.c.l.s8.bf16 %v529
          %v560 = vunpack.c.l.s8.bf16 %v530
          %v561 = vunpack.c.h.s8.bf16 %v529
          %v562 = vunpack.c.h.s8.bf16 %v530
          %v563 = vld [vmem:[#allocation2] sm:$0xff]
          %v564 = vld [vmem:[#allocation2 + $0x8] sm:$0xff]
          %v565 = vld [vmem:[#allocation2 + $0x10] sm:$0xff]
          %v566 = vld [vmem:[#allocation2 + $0x18] sm:$0xff]
          %v567 = vpack.c.bf16 %v565, %v563
          %v568 = vpack.c.bf16 %v566, %v564
          %569 = vmatprep.subr.bf16.mxu0 %v532
          %570 = vmatpush1.bf16.msra.mxu0 %v531
          %571 = vmatprep.subr.bf16.mxu0 %v534
          %572 = vmatpush1.bf16.msra.mxu0 %v533
          %573 = vmatprep.subr.bf16.mxu0 %v536
          %574 = vmatpush1.bf16.msra.mxu0 %v535
          %575 = vmatprep.subr.bf16.mxu0 %v538
          %576 = vmatpush1.bf16.msra.mxu0 %v537
          %577 = vmatprep.subr.bf16.mxu0 %v540
          %578 = vmatpush1.bf16.msra.mxu0 %v539
          %579 = vmatprep.subr.bf16.mxu0 %v542
          %580 = vmatpush1.bf16.msra.mxu0 %v541
          %581 = vmatprep.subr.bf16.mxu0 %v544
          %582 = vmatpush1.bf16.msra.mxu0 %v543
          %583 = vmatprep.subr.bf16.mxu0 %v546
          %584 = vmatpush1.bf16.msra.mxu0 %v545
          %585 = vmatprep.subr.bf16.mxu0 %v548
          %586 = vmatpush1.bf16.msra.mxu0 %v547
          %587 = vmatprep.subr.bf16.mxu0 %v550
          %588 = vmatpush1.bf16.msra.mxu0 %v549
          %589 = vmatprep.subr.bf16.mxu0 %v552
          %590 = vmatpush1.bf16.msra.mxu0 %v551
          %591 = vmatprep.subr.bf16.mxu0 %v554
          %592 = vmatpush1.bf16.msra.mxu0 %v553
          %593 = vmatprep.subr.bf16.mxu0 %v556
          %594 = vmatpush1.bf16.msra.mxu0 %v555
          %595 = vmatprep.subr.bf16.mxu0 %v558
          %596 = vmatpush1.bf16.msra.mxu0 %v557
          %597 = vmatprep.subr.bf16.mxu0 %v560
          %598 = vmatpush1.bf16.msra.mxu0 %v559
          %599 = vmatprep.subr.bf16.mxu0 %v562
          %600 = vmatpush1.bf16.msra.mxu0 %v561
          %601 = vmatprep.mubr.bf16.mxu0 %v568
          %602 = vmatmul.mubr.bf16.gmra.mrb[0].mxu0 %v567
          %v603 = vpop.f32.mrb[0].mxu0
          %v604 = vadd.f32 0.0, %v603
          %v605 = vpop.f32.mrb[0].mxu0
          %v606 = vadd.f32 0.0, %v605
          %v607 = vpop.f32.mrb[0].mxu0
          %v608 = vadd.f32 0.0, %v607
          %v609 = vpop.f32.mrb[0].mxu0
          %v610 = vadd.f32 0.0, %v609
          %611 = vdwg.mxu0
          %s612 = smul.u32 %s22, 2
          %s613 = scalar_lea.vmem %s4, %s612
          %v614 = vld [vmem:[%s613] sm:$0x3]
          %v616 = vlaneseq
          %v617 = vshrl.u32 %v616, 7
          %v618 = vsub.s32 0, %v617
          %v619 = vrot.slane %v614, %v618
          %v620 = vlaneseq
          %v621 = vshrl.u32 %v620, 7
          %v622 = vsub.s32 1, %v621
          %v623 = vrot.slane %v614, %v622
          %v626 = vmul.f32 %v604, %v619
          %v627 = vmul.f32 %v606, %v623
          %v628 = vmul.f32 %v608, %v619
          %v629 = vmul.f32 %v610, %v623
          %s630 = scalar_lea.vmem %s5, %s612
          %v631 = vld [vmem:[%s630] sm:$0x3]
          %v633 = vlaneseq
          %v634 = vshrl.u32 %v633, 7
          %v635 = vsub.s32 0, %v634
          %v636 = vrot.slane %v631, %v635
          %v637 = vlaneseq
          %v638 = vshrl.u32 %v637, 7
          %v639 = vsub.s32 1, %v638
          %v640 = vrot.slane %v631, %v639
          %v643 = vadd.f32 %v626, %v636
          %v644 = vadd.f32 %v627, %v640
          %v645 = vadd.f32 %v628, %v636
          %v646 = vadd.f32 %v629, %v640
          %v647 = vmul.f32 %v643, 0.2
          %v648 = vmul.f32 %v644, 0.2
          %v649 = vmul.f32 %v645, 0.2
          %v650 = vmul.f32 %v646, 0.2
          %v651 = vmax.f32 %v643, %v647
          %v652 = vmax.f32 %v644, %v648
          %v653 = vmax.f32 %v645, %v649
          %v654 = vmax.f32 %v646, %v650
          %655 = vst [vmem:[#allocation2] sm:$0xff] %v651
          %656 = vst [vmem:[#allocation2 + $0x8] sm:$0xff] %v652
          %657 = vst [vmem:[#allocation2 + $0x10] sm:$0xff] %v653
          %658 = vst [vmem:[#allocation2 + $0x18] sm:$0xff] %v654
        $region76: #{tpu_custom_call.1} parent=51 // pred_fallthru
          _
        %p659 = scmp.eq.s32.totalorder %s22, 3
        // Predicated region
        $region77: #{tpu_custom_call.1} parent=51 // pred_check
          %p660 = pneg %p659
        $region78: #{tpu_custom_call.1} parent=51 // pred_check_branch
          %662 = sbr.rel (%p660) target = $region80
        $region79: #{tpu_custom_call.1} parent=51 // pred_region
          %v663 = vld [vmem:[#allocation9] sm:$0xff]
          %v664 = vld [vmem:[#allocation9 + $0x8] sm:$0xff]
          %v665 = vld [vmem:[#allocation9 + $0x10] sm:$0xff]
          %v666 = vld [vmem:[#allocation9 + $0x18] sm:$0xff]
          %v667 = vld [vmem:[#allocation9 + $0x20] sm:$0xff]
          %v668 = vld [vmem:[#allocation9 + $0x28] sm:$0xff]
          %v669 = vld [vmem:[#allocation9 + $0x30] sm:$0xff]
          %v670 = vld [vmem:[#allocation9 + $0x38] sm:$0xff]
          %v671 = vunpack.c.l.s8.bf16 %v663
          %v672 = vunpack.c.h.s8.bf16 %v663
          %v673 = vunpack.c.l.s8.bf16 %v664
          %v674 = vunpack.c.h.s8.bf16 %v664
          %v675 = vunpack.c.l.s8.bf16 %v665
          %v676 = vunpack.c.h.s8.bf16 %v665
          %v677 = vunpack.c.l.s8.bf16 %v666
          %v678 = vunpack.c.h.s8.bf16 %v666
          %v679 = vunpack.c.l.s8.bf16 %v667
          %v680 = vunpack.c.h.s8.bf16 %v667
          %v681 = vunpack.c.l.s8.bf16 %v668
          %v682 = vunpack.c.h.s8.bf16 %v668
          %v683 = vunpack.c.l.s8.bf16 %v669
          %v684 = vunpack.c.h.s8.bf16 %v669
          %v685 = vunpack.c.l.s8.bf16 %v670
          %v686 = vunpack.c.h.s8.bf16 %v670
          %v687 = vld [vmem:[#allocation2] sm:$0xff]
          %v688 = vld [vmem:[#allocation2 + $0x8] sm:$0xff]
          %v689 = vld [vmem:[#allocation2 + $0x10] sm:$0xff]
          %v690 = vld [vmem:[#allocation2 + $0x18] sm:$0xff]
          %v691 = vpack.c.bf16 %v689, %v687
          %v692 = vpack.c.bf16 %v690, %v688
          %693 = vmatprep.subr.bf16.mxu0 0
          %694 = vmatpush1.bf16.msra.mxu0 %v671
          %695 = vmatprep.subr.bf16.mxu0 0
          %696 = vmatpush1.bf16.msra.mxu0 %v672
          %697 = vmatprep.subr.bf16.mxu0 0
          %698 = vmatpush1.bf16.msra.mxu0 %v673
          %699 = vmatprep.subr.bf16.mxu0 0
          %700 = vmatpush1.bf16.msra.mxu0 %v674
          %701 = vmatprep.subr.bf16.mxu0 0
          %702 = vmatpush1.bf16.msra.mxu0 %v675
          %703 = vmatprep.subr.bf16.mxu0 0
          %704 = vmatpush1.bf16.msra.mxu0 %v676
          %705 = vmatprep.subr.bf16.mxu0 0
          %706 = vmatpush1.bf16.msra.mxu0 %v677
          %707 = vmatprep.subr.bf16.mxu0 0
          %708 = vmatpush1.bf16.msra.mxu0 %v678
          %709 = vmatprep.subr.bf16.mxu0 0
          %710 = vmatpush1.bf16.msra.mxu0 %v679
          %711 = vmatprep.subr.bf16.mxu0 0
          %712 = vmatpush1.bf16.msra.mxu0 %v680
          %713 = vmatprep.subr.bf16.mxu0 0
          %714 = vmatpush1.bf16.msra.mxu0 %v681
          %715 = vmatprep.subr.bf16.mxu0 0
          %716 = vmatpush1.bf16.msra.mxu0 %v682
          %717 = vmatprep.subr.bf16.mxu0 0
          %718 = vmatpush1.bf16.msra.mxu0 %v683
          %719 = vmatprep.subr.bf16.mxu0 0
          %720 = vmatpush1.bf16.msra.mxu0 %v684
          %721 = vmatprep.subr.bf16.mxu0 0
          %722 = vmatpush1.bf16.msra.mxu0 %v685
          %723 = vmatprep.subr.bf16.mxu0 0
          %724 = vmatpush1.bf16.msra.mxu0 %v686
          %725 = vmatprep.mubr.bf16.mxu0 %v692
          %726 = vmatmul.mubr.bf16.gmra.mrb[0].mxu0 %v691
          %v727 = vpop.f32.mrb[0].mxu0
          %v728 = vadd.f32 0.0, %v727
          %v729 = vpop.f32.mrb[0].mxu0
          %v730 = vpop.f32.mrb[0].mxu0
          %v731 = vadd.f32 0.0, %v730
          %v732 = vpop.f32.mrb[0].mxu0
          %733 = vdwg.mxu0
          %v734 = vld [vmem:[%s6] sm:$0x1]
          %v736 = vlaneseq
          %v737 = vshrl.u32 %v736, 7
          %v738 = vsub.s32 0, %v737
          %v739 = vrot.slane %v734, %v738
          %v741 = vmul.f32 %v728, %v739
          %v742 = vmul.f32 %v731, %v739
          %v743 = vld [vmem:[%s7] sm:$0x1]
          %v745 = vlaneseq
          %v746 = vshrl.u32 %v745, 7
          %v747 = vsub.s32 0, %v746
          %v748 = vrot.slane %v743, %v747
          %v750 = vadd.f32 %v741, %v748
          %v751 = vadd.f32 %v742, %v748
          %752 = vst [vmem:[#allocation10] sm:$0xff] %v750
          %753 = vst [vmem:[#allocation10 + $0x8] sm:$0xff] %v751
        $region80: #{tpu_custom_call.1} parent=51 // pred_fallthru
          _
        // Predicated region
        $region81: #{tpu_custom_call.1} parent=51 // pred_check
          %p754 = pneg %p214
        $region82: #{tpu_custom_call.1} parent=51 // pred_check_branch
          %756 = sbr.rel (%p754) target = $region84
        $region83: #{tpu_custom_call.1} parent=51 // pred_region
          %s758 = ssub.s32 256, 256
          %759 = vsyncadd [#allocation5], %s758
          %s760 = sshll.u32 [#allocation10], 4
          %s761 = int_to_ptr.vmem [resolvable:$true] %s760
          %766 = dma.vmem_to_hbm [thread:$0]  %s761, 256, %s8, [#allocation5], 128, 128, 8
        $region84: #{tpu_custom_call.1} parent=51 // pred_fallthru
          _
        // Predicated region
        $region85: #{tpu_custom_call.1} parent=51 // pred_check
          %p767 = pneg %p214
        $region86: #{tpu_custom_call.1} parent=51 // pred_check_branch
          %769 = sbr.rel (%p767) target = $region88
        $region87: #{tpu_custom_call.1} parent=51 // pred_region
          %770 = dma.done [#allocation5], 256
        $region88: #{tpu_custom_call.1} parent=51 // pred_fallthru
          _
      $region52: #{tpu_custom_call.1} parent=5 // pred_fallthru
        _
      %p771 = scmp.le.s32.totalorder 2, %s17
      // Predicated region
      $region89: #{tpu_custom_call.1} parent=5 // pred_check
        %p772 = pneg %p771
      $region90: #{tpu_custom_call.1} parent=5 // pred_check_branch
        %774 = sbr.rel (%p772) target = $region92
      $region91: #{tpu_custom_call.1} parent=5 // pred_region
        %s775 = ssub.s32 %s17, 2
      $region92: #{tpu_custom_call.1} parent=5 // pred_fallthru
        _
    $region6: #{tpu_custom_call.1} parent=1 // loop_footer
      %s21 = sadd.s32 1, %s17
    $region7: #{tpu_custom_call.1} parent=1 // loop_footer_branch
      %16 = sbr.rel target = $region3
    $region8: #{tpu_custom_call.1} parent=1 // loop_exit
      _
    %776 = vsyncpa [#allocation4], 1
    %s777 = scalar_lea.sflag [#allocation4], 1
    %778 = vsyncpa %s777, 1
    %779 = vsyncpa [#allocation7], 1
    %780 = vsyncpa [#allocation5], 1
    %s781 = scalar_lea.sflag [#allocation5], 1
    %782 = vsyncpa %s781, 1

</llo_original>
